<compile_context>
chip_gen: v5e
topology: v5e:2x2
jax: 0.10.0
libtpu: 0.0.40
codegen_flags: <defaults>
</compile_context>

<pallas_src>
import math
import numpy as np
import jax
import jax.numpy as jnp
from jax.experimental import pallas as pl
from jax.experimental.pallas import tpu as pltpu


def _sinusoid_table(max_positions: int, embedding_size: int) -> np.ndarray:
    """Deterministic init identical to DistanceEmbedding._init_embedding_table."""
    m = np.zeros([max_positions, embedding_size], dtype=np.float64)
    for d in range(max_positions):
        for i in range(embedding_size):
            if i % 2 == 0:
                m[d][i] = math.sin(d / 10000 ** (i / embedding_size))
            else:
                m[d][i] = math.cos(d / 10000 ** ((i - 1) / embedding_size))
    return m.astype(np.float32)


def _dist_embed_kernel(idx_ref, table_ref, out_ref, cache_ref):
    """One (T-tile, batch) grid step.

    idx_ref:   (tT, 1) int32 -- table-row index for each output row of this tile
    table_ref: (P, E)  f32   -- full sinusoidal table (block index constant)
    out_ref:   (1, tT, E)    -- output slice for (batch b, tile i)
    cache_ref: (tT, E) f32   -- VMEM scratch holding the gathered tile

    The gather is done only at b == 0 (batch axis is innermost / 'arbitrary');
    for b > 0 we just re-store the cached tile, so no MXU/VPU work is repeated
    across the batch.
    """
    b = pl.program_id(1)

    @pl.when(b == 0)
    def _():
        tT = idx_ref.shape[0]
        P = table_ref.shape[0]
        pos = jax.lax.broadcasted_iota(jnp.int32, (tT, P), 1)       # (tT, P)
        onehot = (pos == idx_ref[...]).astype(table_ref.dtype)      # exact 0/1
        cache_ref[...] = jnp.dot(onehot, table_ref[...],
                                 preferred_element_type=jnp.float32)

    out_ref[...] = cache_ref[...][None].astype(out_ref.dtype)


def distance_embedding(inputs: jax.Array, table: jax.Array, *, t_tile: int = 512) -> jax.Array:
    """Pallas implementation of DistanceEmbedding.forward.

    inputs: (B, S, H)  -- only B and S are used (matches PyTorch semantics)
    table:  (max_positions, E)
    returns (B, S*(S+1)//2, E)
    """
    B, S = int(inputs.shape[0]), int(inputs.shape[1])
    P, E = int(table.shape[0]), int(table.shape[1])
    assert S <= P, "seq_len must be <= max_positions"
    T = S * (S + 1) // 2

    # Row indices of the concatenated prefixes: [0..S-1, 0..S-2, ..., 0]
    idx_np = np.concatenate([np.arange(l) for l in range(S, 0, -1)]).astype(np.int32)

    # Tile T.  For small T a single full-extent tile is used (allowed even if
    # not a multiple of 8 because it equals the full dim); for large T we use
    # fixed 8-aligned tiles >= 512 rows to stay above the per-grid-step
    # overhead while keeping the (tT, P) one-hot + buffers well inside VMEM.
    if T <= t_tile:
        tT, nT = T, 1
    else:
        tT = t_tile                       # multiple of 8
        nT = pl.cdiv(T, tT)
        pad = nT * tT - T
        if pad:
            # Pad idx so every idx block is fully in-bounds; the corresponding
            # out-of-range output rows of the last tile are masked by Pallas.
            idx_np = np.concatenate([idx_np, np.zeros((pad,), np.int32)])
    idx = jnp.asarray(idx_np)[:, None]    # (nT*tT, 1)

    return pl.pallas_call(
        _dist_embed_kernel,
        out_shape=jax.ShapeDtypeStruct((B, T, E), table.dtype),
        grid_spec=pltpu.PrefetchScalarGridSpec(
            num_scalar_prefetch=0,
            grid=(nT, B),                                  # batch innermost
            in_specs=[
                pl.BlockSpec((tT, 1), lambda i, b: (i, 0)),   # idx tile
                pl.BlockSpec((P, E), lambda i, b: (0, 0)),    # table (resident)
            ],
            out_specs=pl.BlockSpec((1, tT, E), lambda i, b: (b, i, 0)),
            scratch_shapes=[pltpu.VMEM((tT, E), jnp.float32)],
        ),
        compiler_params=pltpu.CompilerParams(
            # T-tile axis parallel (v7x megacore); batch axis arbitrary because
            # the cached tile in scratch is carried across it.
            dimension_semantics=("parallel", "arbitrary"),
            vmem_limit_bytes=32 * 1024 * 1024,
        ),
    )(idx, table)


if __name__ == "__main__":
    key = jax.random.PRNGKey(0)

    # Small shapes consistent with the module's forward contract.
    # E = 128 keeps the output lane-dense (the module default is 768).
    B, S, H = 2, 8, 32
    MAX_POSITIONS, EMBEDDING_SIZE = 16, 128

    inputs = jax.random.normal(key, (B, S, H), dtype=jnp.float32)
    table_np = _sinusoid_table(MAX_POSITIONS, EMBEDDING_SIZE)
    table = jnp.asarray(table_np)

    out = distance_embedding(inputs, table)
    out = jax.block_until_ready(out)

    # Reference check (same construction as the PyTorch forward).
    ref = np.concatenate([table_np[:l, :] for l in range(S, 0, -1)], axis=0)
    ref = np.broadcast_to(ref[None, :, :], (B, S * (S + 1) // 2, EMBEDDING_SIZE))
    assert out.shape == ref.shape, (out.shape, ref.shape)
    np.testing.assert_allclose(np.asarray(out), ref, atol=1e-5, rtol=1e-5)

    print("KERNEL_OK")
</pallas_src>

<mosaic_0001>
module attributes {stable_mosaic.version = 11 : i64} {
  func.func @_dist_embed_kernel(%arg0: i32, %arg1: i32, %arg2: memref<36x1xi32, #tpu.memory_space<vmem>>, %arg3: memref<16x128xf32, #tpu.memory_space<vmem>>, %arg4: memref<1x36x128xf32, #tpu.memory_space<vmem>>, %arg5: memref<36x128xf32, #tpu.memory_space<vmem>>) attributes {dimension_semantics = [#tpu.dimension_semantics<parallel>, #tpu.dimension_semantics<arbitrary>], iteration_bounds = array<i64: 1, 2>, scalar_prefetch = 0 : i64, scratch_operands = 1 : i64, tpu.core_type = #tpu.core_type<tc>, window_params = [{transform_indices = @transform_0, window_bounds = array<i64: 36, 1>}, {pipeline_mode = #tpu.pipeline_mode<synchronous>, transform_indices = @transform_1, window_bounds = array<i64: 16, 128>}, {transform_indices = @transform_2, window_bounds = array<i64: 1, 36, 128>}]} {
    %c0_i32 = arith.constant 0 : i32
    %0 = arith.cmpi eq, %arg1, %c0_i32 : i32
    %1 = arith.extui %0 : i1 to i32
    %c0_i32_0 = arith.constant 0 : i32
    %2 = arith.cmpi ne, %1, %c0_i32_0 : i32
    scf.if %2 {
      %6 = tpu.iota {dimensions = array<i32: 1>} : vector<36x16xi32>
      %c0_5 = arith.constant 0 : index
      %c0_6 = arith.constant 0 : index
      %7 = vector.load %arg2[%c0_5, %c0_6] : memref<36x1xi32, #tpu.memory_space<vmem>>, vector<36x1xi32>
      %8 = vector.broadcast %7 : vector<36x1xi32> to vector<36x16xi32>
      %9 = arith.cmpi eq, %6, %8 : vector<36x16xi32>
      %10 = arith.extui %9 : vector<36x16xi1> to vector<36x16xi32>
      %11 = arith.sitofp %10 : vector<36x16xi32> to vector<36x16xf32>
      %c0_7 = arith.constant 0 : index
      %c0_8 = arith.constant 0 : index
      %12 = vector.load %arg3[%c0_7, %c0_8] : memref<16x128xf32, #tpu.memory_space<vmem>>, vector<16x128xf32>
      %cst = arith.constant dense<0.000000e+00> : vector<36x128xf32>
      %13 = tpu.matmul %11, %12, %cst {dimension_numbers = #tpu.dot_dimension_numbers<[1], [0], [0], [1], [0, 0, 1, 1], [], []>} : vector<36x16xf32>, vector<16x128xf32>, vector<36x128xf32> -> vector<36x128xf32>
      %c0_9 = arith.constant 0 : index
      %c0_10 = arith.constant 0 : index
      %14 = vector.load %arg5[%c0_9, %c0_10] : memref<36x128xf32, #tpu.memory_space<vmem>>, vector<36x128xf32>
      tpu.vector_store %arg5[%c0_9, %c0_10], %13 {strides = array<i32>} : memref<36x128xf32, #tpu.memory_space<vmem>>, vector<36x128xf32>,
    } else {
    }
    %c0 = arith.constant 0 : index
    %c0_1 = arith.constant 0 : index
    %3 = vector.load %arg5[%c0, %c0_1] : memref<36x128xf32, #tpu.memory_space<vmem>>, vector<36x128xf32>
    %4 = vector.shape_cast %3 : vector<36x128xf32> to vector<1x36x128xf32>
    %c0_2 = arith.constant 0 : index
    %c0_3 = arith.constant 0 : index
    %c0_4 = arith.constant 0 : index
    %5 = vector.load %arg4[%c0_2, %c0_3, %c0_4] : memref<1x36x128xf32, #tpu.memory_space<vmem>>, vector<1x36x128xf32>
    tpu.vector_store %arg4[%c0_2, %c0_3, %c0_4], %4 {strides = array<i32>} : memref<1x36x128xf32, #tpu.memory_space<vmem>>, vector<1x36x128xf32>,
    return
  }
  func.func @transform_0(%arg0: i32, %arg1: i32) -> (i32, i32) {
    %c0_i32 = arith.constant 0 : i32
    %c0_i32_0 = arith.constant 0 : i32
    return %arg0, %c0_i32 : i32, i32
  }
  func.func @transform_1(%arg0: i32, %arg1: i32) -> (i32, i32) {
    %c0_i32 = arith.constant 0 : i32
    %c0_i32_0 = arith.constant 0 : i32
    %c0_i32_1 = arith.constant 0 : i32
    return %c0_i32, %c0_i32_0 : i32, i32
  }
  func.func @transform_2(%arg0: i32, %arg1: i32) -> (i32, i32, i32) {
    %c0_i32 = arith.constant 0 : i32
    %c0_i32_0 = arith.constant 0 : i32
    return %arg1, %arg0, %c0_i32 : i32, i32, i32
  }
}

</mosaic_0001>

<llo_original>
// kernel: tpu_custom_call.1
$region0: #{tpu_custom_call.1}
  #allocation0 [shape = 'u32[]', space=smem, size = 0x4, offset = 0x4, fixed_abs, tag = 'smem constant byte address 0x4 - core index']
  #allocation1 [shape = 'u32[72,128]{1,0:T(1,128)}', space=vmem, size = 0x9000, scoped, tag = 'internal scratch']
  #allocation2 [shape = 'f32[36,128]{1,0:T(8,128)}', space=vmem, size = 0x5000, scoped, tag = 'scratch operand']
  %s0 = inlined_call_operand.vmem [shape: s32[36,1], index: 0, kind: input, shape index: {}]
  %s1 = inlined_call_operand.vmem [shape: f32[16,128], index: 1, kind: input, shape index: {}]
  %s2 = inlined_call_operand.vmem [shape: f32[2,36,128], index: 2, kind: output, shape index: {}]
  %s3 = sld [smem:[#allocation0]]
  $region45: #{tpu_custom_call.1} parent=0
    _
  %s5 = ssub.s32 1, %s3
  %s6 = scalar_select 0, %s5, %s3
  loop: start=0, step=1, limit=4
  $region2: #{tpu_custom_call.1} parent=0 // loop_pre_header
    _
  $region3: #{tpu_custom_call.1} parent=0 // loop_header
    %s8 = sphi 0, %s12
    %p9 = scmp.ge.s32.totalorder %s8, 4
    %s15 = sphi 0, %s27
    %s16 = sphi 0, %s23
    %s17 = sphi 0, %s15
    %s18 = sphi 0, %s16
    %s19 = sphi 0, %s17
    %s20 = sphi 0, %s18
    %s30 = sphi 0, %s32
    %s33 = sphi 0, %s30
    %s34 = sphi 0, %s33
    %s50 = sphi 0, %s34
    %s54 = sphi 0, %s54
    %s56 = sphi 0, %s54
    %s57 = sphi 0, %s56
    %s71 = sphi 0, %s57
    %s79 = sphi 0, %s81
    %s82 = sphi 0, %s79
    %s83 = sphi 0, %s82
    %s99 = sphi 0, %s83
  $region4: #{tpu_custom_call.1} parent=0 // loop_header_branch
    %11 = sbr.rel (%p9) target = $region8
  $region5: #{tpu_custom_call.1} parent=0 // loop_body
    %s13 = ssub.s32 %s8, 1
    %s14 = ssub.s32 %s8, 2
    %s21 = sadd.s32 1, %s16
    %p22 = scmp.ge.s32.totalorder %s21, 2
    %s23 = scalar_select %p22, 0, %s21
    %s24 = sadd.s32 1, %s15
    %s25 = scalar_select %p22, %s24, %s15
    %p26 = scmp.ge.s32.totalorder %s25, 1
    %s27 = scalar_select %p26, 0, %s25
    %s28 = ssub.s32 %s15, %s27
    %p29 = scmp.eq.s32.totalorder %s28, 0
    %s31 = sadd.s32 %s30, 1
    %s32 = scalar_select %p29, %s30, %s31
    %p35 = pneg %p29
    %p36 = scmp.eq.s32.totalorder %s8, 1
    %p37 = por %p35, %p36
    %p38 = scmp.ne.s32.totalorder %s30, %s33
    %p39 = scmp.eq.s32.totalorder %s8, 0
    %p40 = por %p38, %p39
    %p41 = scmp.ne.s32.totalorder %s30, %s33
    %p42 = scmp.eq.s32.totalorder %s13, 1
    %p43 = por %p41, %p42
    %p44 = scmp.ne.s32.totalorder %s33, %s34
    %p45 = scmp.eq.s32.totalorder %s13, 0
    %p46 = por %p44, %p45
    %p47 = scmp.ne.s32.totalorder %s33, %s34
    %p48 = scmp.eq.s32.totalorder %s14, 1
    %p49 = por %p47, %p48
    %p51 = scmp.ne.s32.totalorder %s34, %s50
    %p52 = scmp.eq.s32.totalorder %s14, 0
    %p53 = por %p51, %p52
    %s55 = sadd.s32 %s54, 1
    %p58 = scmp.eq.s32.totalorder %s8, 1
    %p59 = scmp.ne.s32.totalorder %s54, %s56
    %p60 = scmp.eq.s32.totalorder %s8, 0
    %p61 = por %p59, %p60
    %p62 = scmp.ne.s32.totalorder %s54, %s56
    %p63 = scmp.eq.s32.totalorder %s13, 1
    %p64 = por %p62, %p63
    %p65 = scmp.ne.s32.totalorder %s56, %s57
    %p66 = scmp.eq.s32.totalorder %s13, 0
    %p67 = por %p65, %p66
    %p68 = scmp.ne.s32.totalorder %s56, %s57
    %p69 = scmp.eq.s32.totalorder %s14, 1
    %p70 = por %p68, %p69
    %p72 = scmp.ne.s32.totalorder %s57, %s71
    %p73 = scmp.eq.s32.totalorder %s14, 0
    %p74 = por %p72, %p73
    %s75 = ssub.s32 %s16, %s23
    %s76 = ssub.s32 %s15, %s27
    %s77 = sor.u32 %s75, %s76
    %p78 = scmp.eq.s32.totalorder %s77, 0
    %s80 = sadd.s32 %s79, 1
    %s81 = scalar_select %p78, %s79, %s80
    %p84 = pneg %p78
    %p85 = scmp.eq.s32.totalorder %s8, 1
    %p86 = por %p84, %p85
    %p87 = scmp.ne.s32.totalorder %s79, %s82
    %p88 = scmp.eq.s32.totalorder %s8, 0
    %p89 = por %p87, %p88
    %p90 = scmp.ne.s32.totalorder %s79, %s82
    %p91 = scmp.eq.s32.totalorder %s13, 1
    %p92 = por %p90, %p91
    %p93 = scmp.ne.s32.totalorder %s82, %s83
    %p94 = scmp.eq.s32.totalorder %s13, 0
    %p95 = por %p93, %p94
    %p96 = scmp.ne.s32.totalorder %s82, %s83
    %p97 = scmp.eq.s32.totalorder %s14, 1
    %p98 = por %p96, %p97
    %p100 = scmp.ne.s32.totalorder %s83, %s99
    %p101 = scmp.eq.s32.totalorder %s14, 0
    %p102 = por %p100, %p101
    %p103 = scmp.le.s32.totalorder 1, %s8
    %p104 = scmp.lt.s32.totalorder %s8, 3
    %p105 = pnand %p103, %p104
    %p106 = pneg %p105
    // Predicated region
    $region9: #{tpu_custom_call.1} parent=5 // pred_check
      _
    $region10: #{tpu_custom_call.1} parent=5 // pred_check_branch
      %108 = sbr.rel (%p105) target = $region12
    $region11: #{tpu_custom_call.1} parent=5 // pred_region
      %s109 = ssub.s32 %s8, 1
      // Predicated region
      $region13: #{tpu_custom_call.1} parent=11 // pred_check
        %p110 = pneg %p46
      $region14: #{tpu_custom_call.1} parent=11 // pred_check_branch
        %112 = sbr.rel (%p110) target = $region16
      $region15: #{tpu_custom_call.1} parent=11 // pred_region
        %s113 = smul.u32 5, %s17
        %p114 = scmp.lt.s32.totalorder %s113, 4
        %s115 = scalar_select %p114, %s113, 4
        %s116 = smul.addr %s115, 8
        %s117 = scalar_lea.vmem %s0, %s116
        %s118 = smul.u32 5, %s17
      $region16: #{tpu_custom_call.1} parent=11 // pred_fallthru
        _
      // Predicated region
      $region17: #{tpu_custom_call.1} parent=11 // pred_check
        %p119 = pneg %p67
      $region18: #{tpu_custom_call.1} parent=11 // pred_check_branch
        %121 = sbr.rel (%p119) target = $region20
      $region19: #{tpu_custom_call.1} parent=11 // pred_region
        _
      $region20: #{tpu_custom_call.1} parent=11 // pred_fallthru
        _
    $region12: #{tpu_custom_call.1} parent=5 // pred_fallthru
      _
    %p122 = scmp.lt.s32.totalorder %s8, 2
    // Predicated region
    $region21: #{tpu_custom_call.1} parent=5 // pred_check
      %p123 = pneg %p122
    $region22: #{tpu_custom_call.1} parent=5 // pred_check_branch
      %125 = sbr.rel (%p123) target = $region24
    $region23: #{tpu_custom_call.1} parent=5 // pred_region
      _
    $region24: #{tpu_custom_call.1} parent=5 // pred_fallthru
      _
    %p126 = scmp.le.s32.totalorder 1, %s8
    %p127 = scmp.lt.s32.totalorder %s8, 3
    %p128 = pnand %p126, %p127
    %p129 = pneg %p128
    // Predicated region
    $region25: #{tpu_custom_call.1} parent=5 // pred_check
      _
    $region26: #{tpu_custom_call.1} parent=5 // pred_check_branch
      %131 = sbr.rel (%p128) target = $region28
    $region27: #{tpu_custom_call.1} parent=5 // pred_region
      %s132 = ssub.s32 %s8, 1
      %s133 = smul.u32 5, %s17
      %p134 = scmp.lt.s32.totalorder %s133, 4
      %s135 = scalar_select %p134, %s133, 4
      %s136 = smul.addr %s135, 8
      %s137 = scalar_lea.vmem %s0, %s136
      %p138 = pneg %p46
      %p139 = pneg %p43
      %p140 = pneg %p67
      %p141 = pneg %p64
      %p142 = pneg %p95
      %p143 = pneg %p92
      %s144 = smul.u32 5, %s17
      %p145 = scmp.lt.s32.totalorder %s18, 1
      %s146 = scalar_select %p145, %s18, 1
      %p147 = scmp.lt.s32.totalorder %s144, 4
      %s148 = scalar_select %p147, %s144, 4
      %s149 = smul.addr %s146, 5
      %s150 = sadd.s32 %s148, %s149
      %s151 = smul.addr %s150, 8
      %s152 = scalar_lea.vmem %s2, %s151
      %s153 = smul.u32 5, %s17
      %p154 = scmp.lt.s32.totalorder %s153, 4
      %s155 = scalar_select %p154, %s153, 4
      %s156 = smul.addr %s155, 8
      %s157 = scalar_lea.vmem %s0, %s156
      %s158 = smul.u32 5, %s17
      %s159 = smul.u32 5, %s17
      %p160 = scmp.lt.s32.totalorder %s18, 1
      %s161 = scalar_select %p160, %s18, 1
      %p162 = scmp.lt.s32.totalorder %s159, 4
      %s163 = scalar_select %p162, %s159, 4
      %s164 = smul.addr %s161, 5
      %s165 = sadd.s32 %s163, %s164
      %s166 = smul.addr %s165, 8
      %s167 = scalar_lea.vmem %s2, %s166
      %s168 = smul.u32 5, %s17
      %p169 = scmp.eq.s32.totalorder %s18, 0
      // Predicated region
      $region29: #{tpu_custom_call.1} parent=27 // pred_check
        %p170 = pneg %p169
      $region30: #{tpu_custom_call.1} parent=27 // pred_check_branch
        %172 = sbr.rel (%p170) target = $region32
      $region31: #{tpu_custom_call.1} parent=27 // pred_region
        %v173 = vlaneseq
        %v174 = vand.u32 %v173, 127
        %v175 = vld [vmem:[%s157] sm:$0xff]
        %v176 = vld [vmem:[%s157 + $0x8] sm:$0xff]
        %v177 = vld [vmem:[%s157 + $0x10] sm:$0xff]
        %v178 = vld [vmem:[%s157 + $0x18] sm:$0xff]
        %v179 = vld [vmem:[%s157 + $0x20] sm:$0xf]
        %180 = vset.pattern.permute.xlu0 0
        %181 = vperm.xlu0 %180, %v175
        %v182 = vpop.permute.xlu0 %181
        %183 = vset.pattern.permute.xlu0 0
        %184 = vperm.xlu0 %183, %v176
        %v185 = vpop.permute.xlu0 %184
        %186 = vset.pattern.permute.xlu0 0
        %187 = vperm.xlu0 %186, %v177
        %v188 = vpop.permute.xlu0 %187
        %189 = vset.pattern.permute.xlu0 0
        %190 = vperm.xlu0 %189, %v178
        %v191 = vpop.permute.xlu0 %190
        %192 = vset.pattern.permute.xlu0 0
        %193 = vperm.xlu0 %192, %v179
        %v194 = vpop.permute.xlu0 %193
        %vm195 = vcmp.eq.s32.totalorder %v174, %v182
        %vm196 = vcmp.eq.s32.totalorder %v174, %v185
        %vm197 = vcmp.eq.s32.totalorder %v174, %v188
        %vm198 = vcmp.eq.s32.totalorder %v174, %v191
        %vm199 = vcmp.eq.s32.totalorder %v174, %v194
        %v200 = vsel %vm195, 1, 0
        %v201 = vsel %vm196, 1, 0
        %v202 = vsel %vm197, 1, 0
        %v203 = vsel %vm198, 1, 0
        %v204 = vsel %vm199, 1, 0
        %v205 = vcvt.s32.f32 %v200
        %v206 = vcvt.s32.f32 %v201
        %v207 = vcvt.s32.f32 %v202
        %v208 = vcvt.s32.f32 %v203
        %v209 = vcvt.s32.f32 %v204
        %v210 = vld [vmem:[%s1] sm:$0xff]
        %v211 = vld [vmem:[%s1 + $0x8] sm:$0xff]
        %vm212 = vcmask 130048
        %v214 = vsel %vm212, %v205, 0
        %v217 = vsel %vm212, %v206, 0
        %v220 = vsel %vm212, %v207, 0
        %v223 = vsel %vm212, %v208, 0
        %v226 = vsel %vm212, %v209, 0
        %228 = vmatpush.msra.mxu0 0.0
        %229 = vmatpush.msra.mxu0 0.0
        %230 = vmatpush.msra.mxu0 0.0
        %231 = vmatpush.msra.mxu0 0.0
        %232 = vmatpush.msra.mxu0 0.0
        %233 = vmatpush.msra.mxu0 0.0
        %234 = vmatpush.msra.mxu0 0.0
        %235 = vmatpush.msra.mxu0 0.0
        %236 = vmatpush.msra.mxu0 0.0
        %237 = vmatpush.msra.mxu0 0.0
        %238 = vmatpush.msra.mxu0 0.0
        %239 = vmatpush.msra.mxu0 0.0
        %240 = vmatpush.msra.mxu0 0.0
        %241 = vmatpush.msra.mxu0 0.0
        %242 = vmatpush.msra.mxu0 %v211
        %243 = vmatpush.msra.mxu0 %v210
        %244 = vmatmul.f32.gmra.mxu0 %v214
        %v245 = vpop.f32.mrf.mxu0
        %v246 = vadd.f32 0.0, %v245
        %247 = vmatmul.f32.gmra.mxu0 %v217
        %v248 = vpop.f32.mrf.mxu0
        %v249 = vadd.f32 0.0, %v248
        %250 = vmatmul.f32.gmra.mxu0 %v220
        %v251 = vpop.f32.mrf.mxu0
        %v252 = vadd.f32 0.0, %v251
        %253 = vmatmul.f32.gmra.mxu0 %v223
        %v254 = vpop.f32.mrf.mxu0
        %v255 = vadd.f32 0.0, %v254
        %256 = vmatmul.f32.gmra.mxu0 %v226
        %v257 = vpop.f32.mrf.mxu0
        %v258 = vadd.f32 0.0, %v257
        %259 = vdwg.mxu0
        %260 = vst [vmem:[#allocation2] sm:$0xff] %v246
        %261 = vst [vmem:[#allocation2 + $0x8] sm:$0xff] %v249
        %262 = vst [vmem:[#allocation2 + $0x10] sm:$0xff] %v252
        %263 = vst [vmem:[#allocation2 + $0x18] sm:$0xff] %v255
        %264 = vst [vmem:[#allocation2 + $0x20] sm:$0xf] %v258
      $region32: #{tpu_custom_call.1} parent=27 // pred_fallthru
        _
      %v265 = vld [vmem:[#allocation2] sm:$0xff]
      %v266 = vld [vmem:[#allocation2 + $0x8] sm:$0xff]
      %v267 = vld [vmem:[#allocation2 + $0x10] sm:$0xff]
      %v268 = vld [vmem:[#allocation2 + $0x18] sm:$0xff]
      %v269 = vld [vmem:[#allocation2 + $0x20] sm:$0xf]
      %270 = vst [vmem:[%s167] sm:$0xff] %v265
      %271 = vst [vmem:[%s167 + $0x8] sm:$0xff] %v266
      %272 = vst [vmem:[%s167 + $0x10] sm:$0xff] %v267
      %273 = vst [vmem:[%s167 + $0x18] sm:$0xff] %v268
      %274 = vst [vmem:[%s167 + $0x20] sm:$0xf] %v269
      %s275 = smul.u32 5, %s17
      %p276 = scmp.lt.s32.totalorder %s18, 1
      %s277 = scalar_select %p276, %s18, 1
      %p278 = scmp.lt.s32.totalorder %s275, 4
      %s279 = scalar_select %p278, %s275, 4
      %s280 = smul.addr %s277, 5
      %s281 = sadd.s32 %s279, %s280
      %s282 = smul.addr %s281, 8
      %s283 = scalar_lea.vmem %s2, %s282
      // Predicated region
      $region33: #{tpu_custom_call.1} parent=27 // pred_check
        %p284 = pneg %p92
      $region34: #{tpu_custom_call.1} parent=27 // pred_check_branch
        %286 = sbr.rel (%p284) target = $region36
      $region35: #{tpu_custom_call.1} parent=27 // pred_region
        %s287 = smul.u32 5, %s17
      $region36: #{tpu_custom_call.1} parent=27 // pred_fallthru
        _
    $region28: #{tpu_custom_call.1} parent=5 // pred_fallthru
      _
    %p288 = scmp.le.s32.totalorder 2, %s8
    // Predicated region
    $region37: #{tpu_custom_call.1} parent=5 // pred_check
      %p289 = pneg %p288
    $region38: #{tpu_custom_call.1} parent=5 // pred_check_branch
      %291 = sbr.rel (%p289) target = $region40
    $region39: #{tpu_custom_call.1} parent=5 // pred_region
      %s292 = ssub.s32 %s8, 2
      // Predicated region
      $region41: #{tpu_custom_call.1} parent=39 // pred_check
        %p293 = pneg %p98
      $region42: #{tpu_custom_call.1} parent=39 // pred_check_branch
        %295 = sbr.rel (%p293) target = $region44
      $region43: #{tpu_custom_call.1} parent=39 // pred_region
        %s296 = smul.u32 5, %s19
        %p297 = scmp.lt.s32.totalorder %s20, 1
        %s298 = scalar_select %p297, %s20, 1
        %p299 = scmp.lt.s32.totalorder %s296, 4
        %s300 = scalar_select %p299, %s296, 4
        %s301 = smul.addr %s298, 5
        %s302 = sadd.s32 %s300, %s301
        %s303 = smul.addr %s302, 8
        %s304 = scalar_lea.vmem %s2, %s303
      $region44: #{tpu_custom_call.1} parent=39 // pred_fallthru
        _
    $region40: #{tpu_custom_call.1} parent=5 // pred_fallthru
      _
  $region6: #{tpu_custom_call.1} parent=0 // loop_footer
    %s12 = sadd.s32 1, %s8
  $region7: #{tpu_custom_call.1} parent=0 // loop_footer_branch
    %7 = sbr.rel target = $region3
  $region8: #{tpu_custom_call.1} parent=0 // loop_exit
    _

</llo_original>
